<compile_context>
chip_gen: v7x
topology: tpu7x:2x2x1
jax: 0.10.0
libtpu: 0.0.40
codegen_flags: <defaults>
</compile_context>

<pallas_src>
import jax
import jax.numpy as jnp
from jax.experimental import pallas as pl
from jax.experimental.pallas import tpu as pltpu


def _fwd_diff_sq(x):
    """x: (B, H, W) float32 -> dx**2 + dy**2 with replication-padded forward diffs."""
    # Shift-left with edge replication along W and H; the last column / row of the
    # difference is then exactly 0, matching ReplicationPad2d([0,1,0,1]) + conv.
    x_right = jnp.concatenate([x[:, :, 1:], x[:, :, -1:]], axis=2)
    x_down = jnp.concatenate([x[:, 1:, :], x[:, -1:, :]], axis=1)
    dx = x - x_right
    dy = x - x_down
    return dx * dx + dy * dy


def _variation_kernel(x_ref, out_ref):
    # x_ref: (B, H, W) VMEM block (native dtype). out_ref: (1, 1) SMEM partial.
    v = _fwd_diff_sq(x_ref[...].astype(jnp.float32))
    out_ref[0, 0] = jnp.sum(v)


def _variation_weighted_kernel(x_ref, w_ref, out_ref):
    # out_ref: (1, 2) SMEM partial = [sum(variation * w), sum(w)].
    v = _fwd_diff_sq(x_ref[...].astype(jnp.float32))
    w = w_ref[...].astype(jnp.float32)
    out_ref[0, 0] = jnp.sum(v * w)
    out_ref[0, 1] = jnp.sum(w)


def _largest_divisor_at_most(n, cap):
    cap = int(max(1, min(n, cap)))
    for d in range(cap, 0, -1):
        if n % d == 0:
            return d
    return 1


def variation_loss(image, weight=None, mean=False):
    """Equivalent of VariationLoss(nc)(image, weight, mean). Returns a scalar."""
    N, C, H, W = image.shape
    NC = N * C
    x = image.reshape(NC, H, W)

    # Planes per grid step: target ~1-2 MiB per streamed input block so that
    # (2 pipeline buffers) x (1 or 2 inputs) stays far below the scoped-VMEM
    # defaults on every TPU generation (16 MiB v5e, 32 MiB v6e/v7x).
    itemsize = jnp.dtype(image.dtype).itemsize
    target_block_bytes = (1 << 21) if weight is None else (1 << 20)
    max_planes = max(1, target_block_bytes // max(1, H * W * itemsize))
    B = _largest_divisor_at_most(NC, max_planes)
    G = NC // B

    compiler_params = pltpu.CompilerParams(dimension_semantics=("parallel",))

    if weight is None:
        partials = pl.pallas_call(
            _variation_kernel,
            out_shape=jax.ShapeDtypeStruct((G, 1), jnp.float32),
            grid_spec=pltpu.PrefetchScalarGridSpec(
                num_scalar_prefetch=0,
                grid=(G,),
                in_specs=[pl.BlockSpec((B, H, W), lambda i: (i, 0, 0))],
                out_specs=pl.BlockSpec((1, 1), lambda i: (i, 0),
                                       memory_space=pltpu.MemorySpace.SMEM),
            ),
            compiler_params=compiler_params,
        )(x)
        vsum = jnp.sum(partials[:, 0])
        if mean:
            # variation.mean() == variation.sum() / numel
            return vsum / jnp.float32(NC * H * W)
        return vsum

    w = weight.reshape(NC, H, W)  # keep native dtype in HBM; cast inside kernel
    partials = pl.pallas_call(
        _variation_weighted_kernel,
        out_shape=jax.ShapeDtypeStruct((G, 2), jnp.float32),
        grid_spec=pltpu.PrefetchScalarGridSpec(
            num_scalar_prefetch=0,
            grid=(G,),
            in_specs=[
                pl.BlockSpec((B, H, W), lambda i: (i, 0, 0)),
                pl.BlockSpec((B, H, W), lambda i: (i, 0, 0)),
            ],
            out_specs=pl.BlockSpec((1, 2), lambda i: (i, 0),
                                   memory_space=pltpu.MemorySpace.SMEM),
        ),
        compiler_params=compiler_params,
    )(x, w)
    vsum = jnp.sum(partials[:, 0])
    if mean:
        wsum = jnp.sum(partials[:, 1])
        return vsum / wsum
    return vsum


def _reference(image, weight=None, mean=False):
    """Plain-JAX reference mirroring the PyTorch module (for verification)."""
    dx = image[..., :, :-1] - image[..., :, 1:]
    dx = jnp.pad(dx, ((0, 0), (0, 0), (0, 0), (0, 1)))
    dy = image[..., :-1, :] - image[..., 1:, :]
    dy = jnp.pad(dy, ((0, 0), (0, 0), (0, 1), (0, 0)))
    var = dx ** 2 + dy ** 2
    if weight is not None:
        var = var * weight.astype(jnp.float32)
        if mean:
            return var.sum() / weight.sum()
    if mean:
        return var.mean()
    return var.sum()


if __name__ == "__main__":
    key = jax.random.PRNGKey(0)
    k1, k2 = jax.random.split(key)
    # nc = 4 channels, batch 2, 16x16 spatial (NCHW, like the PyTorch module).
    image = jax.random.normal(k1, (2, 4, 16, 16), dtype=jnp.float32)
    weight = jax.random.uniform(k2, (2, 4, 16, 16), dtype=jnp.float32)

    # Default path: weight=None, mean=False -> variation.sum()
    out_sum = jax.block_until_ready(variation_loss(image))
    ref_sum = _reference(image)
    assert jnp.allclose(out_sum, ref_sum, rtol=1e-5, atol=1e-5)

    # Weighted sum path: sum(var * w)
    out_ws = jax.block_until_ready(variation_loss(image, weight=weight))
    ref_ws = _reference(image, weight=weight)
    assert jnp.allclose(out_ws, ref_ws, rtol=1e-5, atol=1e-5)

    # Weighted mean path: sum(var * w) / sum(w)
    out_wm = jax.block_until_ready(variation_loss(image, weight=weight, mean=True))
    ref_wm = _reference(image, weight=weight, mean=True)
    assert jnp.allclose(out_wm, ref_wm, rtol=1e-5, atol=1e-5)

    # Unweighted mean path: variation.mean()
    out_m = jax.block_until_ready(variation_loss(image, mean=True))
    ref_m = _reference(image, mean=True)
    assert jnp.allclose(out_m, ref_m, rtol=1e-5, atol=1e-5)

    print("KERNEL_OK")
</pallas_src>

<mosaic_0001>
module attributes {stable_mosaic.version = 11 : i64} {
  func.func @_variation_kernel(%arg0: i32, %arg1: memref<8x16x16xf32, #tpu.memory_space<vmem>>, %arg2: memref<1x1xf32, #tpu.memory_space<smem>>) attributes {dimension_semantics = [#tpu.dimension_semantics<parallel>], iteration_bounds = array<i64: 1>, scalar_prefetch = 0 : i64, scratch_operands = 0 : i64, tpu.core_type = #tpu.core_type<tc>, window_params = [{transform_indices = @transform_0, window_bounds = array<i64: 8, 16, 16>}, {transform_indices = @transform_1, window_bounds = array<i64: 1, 1>}]} {
    %c0 = arith.constant 0 : index
    %c0_0 = arith.constant 0 : index
    %c0_1 = arith.constant 0 : index
    %0 = vector.load %arg1[%c0, %c0_0, %c0_1] : memref<8x16x16xf32, #tpu.memory_space<vmem>>, vector<8x16x16xf32>
    %1 = vector.extract_strided_slice %0 {offsets = [0, 0, 1], sizes = [8, 16, 15], strides = [1, 1, 1]} : vector<8x16x16xf32> to vector<8x16x15xf32>
    %2 = vector.extract_strided_slice %0 {offsets = [0, 0, 15], sizes = [8, 16, 1], strides = [1, 1, 1]} : vector<8x16x16xf32> to vector<8x16x1xf32>
    %3 = tpu.concatenate %1, %2 in 2 : vector<8x16x15xf32>, vector<8x16x1xf32> -> vector<8x16x16xf32>
    %4 = vector.extract_strided_slice %0 {offsets = [0, 1, 0], sizes = [8, 15, 16], strides = [1, 1, 1]} : vector<8x16x16xf32> to vector<8x15x16xf32>
    %5 = vector.extract_strided_slice %0 {offsets = [0, 15, 0], sizes = [8, 1, 16], strides = [1, 1, 1]} : vector<8x16x16xf32> to vector<8x1x16xf32>
    %6 = tpu.concatenate %4, %5 in 1 : vector<8x15x16xf32>, vector<8x1x16xf32> -> vector<8x16x16xf32>
    %7 = arith.subf %0, %3 : vector<8x16x16xf32>
    %8 = arith.subf %0, %6 : vector<8x16x16xf32>
    %9 = arith.mulf %7, %7 : vector<8x16x16xf32>
    %10 = arith.mulf %8, %8 : vector<8x16x16xf32>
    %11 = arith.addf %9, %10 : vector<8x16x16xf32>
    %12 = vector.shape_cast %11 : vector<8x16x16xf32> to vector<1x8x16x16xf32>
    %cst = arith.constant dense<0.000000e+00> : vector<1xf32>
    %13 = vector.multi_reduction <add>, %12, %cst [1, 2, 3] : vector<1x8x16x16xf32> to vector<1xf32>
    %14 = vector.shape_cast %13 : vector<1xf32> to vector<1x1x1x1xf32>
    %15 = vector.extract %14[0, 0, 0, 0] : f32 from vector<1x1x1x1xf32>
    %c0_2 = arith.constant 0 : index
    %c0_3 = arith.constant 0 : index
    %16 = memref.load %arg2[%c0_2, %c0_3] : memref<1x1xf32, #tpu.memory_space<smem>>
    memref.store %15, %arg2[%c0_2, %c0_3] : memref<1x1xf32, #tpu.memory_space<smem>>
    return
  }
  func.func @transform_0(%arg0: i32) -> (i32, i32, i32) {
    %c0_i32 = arith.constant 0 : i32
    %c0_i32_0 = arith.constant 0 : i32
    %c0_i32_1 = arith.constant 0 : i32
    return %arg0, %c0_i32, %c0_i32_0 : i32, i32, i32
  }
  func.func @transform_1(%arg0: i32) -> (i32, i32) {
    %c0_i32 = arith.constant 0 : i32
    %c0_i32_0 = arith.constant 0 : i32
    return %arg0, %c0_i32 : i32, i32
  }
}

</mosaic_0001>

<llo_original>
// kernel: tpu_custom_call.1
$region0: #{tpu_custom_call.1}
  #allocation0 [shape = 'u32[]', space=smem, size = 0x4, offset = 0x4, fixed_abs, tag = 'smem constant byte address 0x4 - core index']
  #allocation1 [shape = 'u32[144,128]{1,0:T(1,128)}', space=vmem, size = 0x12000, scoped, tag = 'internal scratch']
  %s0 = inlined_call_operand.hbm [shape: f32[8,16,16], index: 0, kind: input, shape index: {}]
  %s1 = inlined_call_operand.hbm [shape: f32[1,1], index: 1, kind: output, shape index: {}]
  %s2 = sld [smem:[#allocation0]]
  $region18: #{tpu_custom_call.1} parent=0
    _
  %s4 = ssub.s32 1, %s2
  %s5 = scalar_select 0, %s4, %s2
  $region1: #{tpu_custom_call.1} parent=0
    #allocation2 [shape = 'u8[65536]{0}', space=vmem, size = 0x10000, scoped, tag = 'input window, operand 0, single buffered']
    #allocation3 [shape = 's32[1]{0}', space=sflag, size = 0x4, scoped, tag = 'scoped memory for tpu_custom_call.1']
    #allocation4 [shape = 's32[1]{0}', space=sflag, size = 0x4, scoped, tag = 'scoped memory for tpu_custom_call.1']
    #allocation5 [shape = 'u8[512]{0}', space=smem, size = 0x200, scoped, tag = 'output window, operand 0, single buffered']
    %6 = vsyncpa [#allocation3], 0
    %7 = vsyncpa [#allocation4], 0
    // Predicated region
    $region2: #{tpu_custom_call.1} parent=1 // pred_check
      _
    $region3: #{tpu_custom_call.1} parent=1 // pred_check_branch
      %9 = sbr.rel (0) target = $region5
    $region4: #{tpu_custom_call.1} parent=1 // pred_region
      %s11 = ssub.s32 2048, 2048
      %12 = vsyncadd [#allocation3], %s11
      %s13 = sshll.u32 [#allocation2], 4
      %s14 = int_to_ptr.vmem [resolvable:$true] %s13
      %19 = dma.hbm_to_vmem [thread:$0]  %s0, 2048, %s14, [#allocation3], 128, 128, 8
    $region5: #{tpu_custom_call.1} parent=1 // pred_fallthru
      _
    // Predicated region
    $region6: #{tpu_custom_call.1} parent=1 // pred_check
      _
    $region7: #{tpu_custom_call.1} parent=1 // pred_check_branch
      %21 = sbr.rel (0) target = $region9
    $region8: #{tpu_custom_call.1} parent=1 // pred_region
      %22 = dma.done [#allocation3], 2048
    $region9: #{tpu_custom_call.1} parent=1 // pred_fallthru
      _
    %v23 = vld [vmem:[#allocation2] sm:$0xff]
    %v24 = vld [vmem:[#allocation2 + $0x8] sm:$0xff]
    %v25 = vld [vmem:[#allocation2 + $0x10] sm:$0xff]
    %v26 = vld [vmem:[#allocation2 + $0x18] sm:$0xff]
    %v27 = vld [vmem:[#allocation2 + $0x20] sm:$0xff]
    %v28 = vld [vmem:[#allocation2 + $0x28] sm:$0xff]
    %v29 = vld [vmem:[#allocation2 + $0x30] sm:$0xff]
    %v30 = vld [vmem:[#allocation2 + $0x38] sm:$0xff]
    %v31 = vld [vmem:[#allocation2 + $0x40] sm:$0xff]
    %v32 = vld [vmem:[#allocation2 + $0x48] sm:$0xff]
    %v33 = vld [vmem:[#allocation2 + $0x50] sm:$0xff]
    %v34 = vld [vmem:[#allocation2 + $0x58] sm:$0xff]
    %v35 = vld [vmem:[#allocation2 + $0x60] sm:$0xff]
    %v36 = vld [vmem:[#allocation2 + $0x68] sm:$0xff]
    %v37 = vld [vmem:[#allocation2 + $0x70] sm:$0xff]
    %v38 = vld [vmem:[#allocation2 + $0x78] sm:$0xff]
    %55 = vrot.lane.b32.xlu0 %v23, 127
    %v56 = vpop.permute.xlu0 %55
    %57 = vrot.lane.b32.xlu0 %v24, 127
    %v58 = vpop.permute.xlu0 %57
    %59 = vrot.lane.b32.xlu0 %v25, 127
    %v60 = vpop.permute.xlu0 %59
    %61 = vrot.lane.b32.xlu0 %v26, 127
    %v62 = vpop.permute.xlu0 %61
    %63 = vrot.lane.b32.xlu0 %v27, 127
    %v64 = vpop.permute.xlu0 %63
    %65 = vrot.lane.b32.xlu0 %v28, 127
    %v66 = vpop.permute.xlu0 %65
    %67 = vrot.lane.b32.xlu0 %v29, 127
    %v68 = vpop.permute.xlu0 %67
    %69 = vrot.lane.b32.xlu0 %v30, 127
    %v70 = vpop.permute.xlu0 %69
    %71 = vrot.lane.b32.xlu0 %v31, 127
    %v72 = vpop.permute.xlu0 %71
    %73 = vrot.lane.b32.xlu0 %v32, 127
    %v74 = vpop.permute.xlu0 %73
    %75 = vrot.lane.b32.xlu0 %v33, 127
    %v76 = vpop.permute.xlu0 %75
    %77 = vrot.lane.b32.xlu0 %v34, 127
    %v78 = vpop.permute.xlu0 %77
    %79 = vrot.lane.b32.xlu0 %v35, 127
    %v80 = vpop.permute.xlu0 %79
    %81 = vrot.lane.b32.xlu0 %v36, 127
    %v82 = vpop.permute.xlu0 %81
    %83 = vrot.lane.b32.xlu0 %v37, 127
    %v84 = vpop.permute.xlu0 %83
    %85 = vrot.lane.b32.xlu0 %v38, 127
    %v86 = vpop.permute.xlu0 %85
    %vm103 = vcmask 121856
    %v104 = vsel %vm103, %v56, %v23
    %v105 = vsel %vm103, %v58, %v24
    %v106 = vsel %vm103, %v60, %v25
    %v107 = vsel %vm103, %v62, %v26
    %v108 = vsel %vm103, %v64, %v27
    %v109 = vsel %vm103, %v66, %v28
    %v110 = vsel %vm103, %v68, %v29
    %v111 = vsel %vm103, %v70, %v30
    %v112 = vsel %vm103, %v72, %v31
    %v113 = vsel %vm103, %v74, %v32
    %v114 = vsel %vm103, %v76, %v33
    %v115 = vsel %vm103, %v78, %v34
    %v116 = vsel %vm103, %v80, %v35
    %v117 = vsel %vm103, %v82, %v36
    %v118 = vsel %vm103, %v84, %v37
    %v119 = vsel %vm103, %v86, %v38
    %vm120 = vcmask 1046528
    %v121 = vrot.slane %v23, 1
    %v122 = vrot.slane %v24, 1
    %v123 = vsel %vm120, %v121, %v122
    %v124 = vrot.slane %v25, 1
    %v125 = vrot.slane %v26, 1
    %v126 = vsel %vm120, %v124, %v125
    %v127 = vrot.slane %v27, 1
    %v128 = vrot.slane %v28, 1
    %v129 = vsel %vm120, %v127, %v128
    %v130 = vrot.slane %v29, 1
    %v131 = vrot.slane %v30, 1
    %v132 = vsel %vm120, %v130, %v131
    %v133 = vrot.slane %v31, 1
    %v134 = vrot.slane %v32, 1
    %v135 = vsel %vm120, %v133, %v134
    %v136 = vrot.slane %v33, 1
    %v137 = vrot.slane %v34, 1
    %v138 = vsel %vm120, %v136, %v137
    %v139 = vrot.slane %v35, 1
    %v140 = vrot.slane %v36, 1
    %v141 = vsel %vm120, %v139, %v140
    %v142 = vrot.slane %v37, 1
    %v143 = vrot.slane %v38, 1
    %v144 = vsel %vm120, %v142, %v143
    %v161 = vsel %vm120, %v122, %v24
    %v162 = vsel %vm120, %v125, %v26
    %v163 = vsel %vm120, %v128, %v28
    %v164 = vsel %vm120, %v131, %v30
    %v165 = vsel %vm120, %v134, %v32
    %v166 = vsel %vm120, %v137, %v34
    %v167 = vsel %vm120, %v140, %v36
    %v168 = vsel %vm120, %v143, %v38
    %v169 = vsub.f32 %v23, %v104
    %v170 = vsub.f32 %v24, %v105
    %v171 = vsub.f32 %v25, %v106
    %v172 = vsub.f32 %v26, %v107
    %v173 = vsub.f32 %v27, %v108
    %v174 = vsub.f32 %v28, %v109
    %v175 = vsub.f32 %v29, %v110
    %v176 = vsub.f32 %v30, %v111
    %v177 = vsub.f32 %v31, %v112
    %v178 = vsub.f32 %v32, %v113
    %v179 = vsub.f32 %v33, %v114
    %v180 = vsub.f32 %v34, %v115
    %v181 = vsub.f32 %v35, %v116
    %v182 = vsub.f32 %v36, %v117
    %v183 = vsub.f32 %v37, %v118
    %v184 = vsub.f32 %v38, %v119
    %v185 = vsub.f32 %v23, %v123
    %v186 = vsub.f32 %v24, %v161
    %v187 = vsub.f32 %v25, %v126
    %v188 = vsub.f32 %v26, %v162
    %v189 = vsub.f32 %v27, %v129
    %v190 = vsub.f32 %v28, %v163
    %v191 = vsub.f32 %v29, %v132
    %v192 = vsub.f32 %v30, %v164
    %v193 = vsub.f32 %v31, %v135
    %v194 = vsub.f32 %v32, %v165
    %v195 = vsub.f32 %v33, %v138
    %v196 = vsub.f32 %v34, %v166
    %v197 = vsub.f32 %v35, %v141
    %v198 = vsub.f32 %v36, %v167
    %v199 = vsub.f32 %v37, %v144
    %v200 = vsub.f32 %v38, %v168
    %v201 = vmul.f32 %v169, %v169
    %v202 = vmul.f32 %v170, %v170
    %v203 = vmul.f32 %v171, %v171
    %v204 = vmul.f32 %v172, %v172
    %v205 = vmul.f32 %v173, %v173
    %v206 = vmul.f32 %v174, %v174
    %v207 = vmul.f32 %v175, %v175
    %v208 = vmul.f32 %v176, %v176
    %v209 = vmul.f32 %v177, %v177
    %v210 = vmul.f32 %v178, %v178
    %v211 = vmul.f32 %v179, %v179
    %v212 = vmul.f32 %v180, %v180
    %v213 = vmul.f32 %v181, %v181
    %v214 = vmul.f32 %v182, %v182
    %v215 = vmul.f32 %v183, %v183
    %v216 = vmul.f32 %v184, %v184
    %v217 = vmul.f32 %v185, %v185
    %v218 = vmul.f32 %v186, %v186
    %v219 = vmul.f32 %v187, %v187
    %v220 = vmul.f32 %v188, %v188
    %v221 = vmul.f32 %v189, %v189
    %v222 = vmul.f32 %v190, %v190
    %v223 = vmul.f32 %v191, %v191
    %v224 = vmul.f32 %v192, %v192
    %v225 = vmul.f32 %v193, %v193
    %v226 = vmul.f32 %v194, %v194
    %v227 = vmul.f32 %v195, %v195
    %v228 = vmul.f32 %v196, %v196
    %v229 = vmul.f32 %v197, %v197
    %v230 = vmul.f32 %v198, %v198
    %v231 = vmul.f32 %v199, %v199
    %v232 = vmul.f32 %v200, %v200
    %v233 = vadd.f32 %v201, %v217
    %v234 = vadd.f32 %v202, %v218
    %v235 = vadd.f32 %v203, %v219
    %v236 = vadd.f32 %v204, %v220
    %v237 = vadd.f32 %v205, %v221
    %v238 = vadd.f32 %v206, %v222
    %v239 = vadd.f32 %v207, %v223
    %v240 = vadd.f32 %v208, %v224
    %v241 = vadd.f32 %v209, %v225
    %v242 = vadd.f32 %v210, %v226
    %v243 = vadd.f32 %v211, %v227
    %v244 = vadd.f32 %v212, %v228
    %v245 = vadd.f32 %v213, %v229
    %v246 = vadd.f32 %v214, %v230
    %v247 = vadd.f32 %v215, %v231
    %v248 = vadd.f32 %v216, %v232
    %vm249 = vcmask 130048
    %v250 = vsel %vm249, %v233, 0.0
    %v251 = vsel %vm249, %v234, 0.0
    %v252 = vadd.f32 %v250, %v251
    %v253 = vsel %vm249, %v235, 0.0
    %v254 = vadd.f32 %v252, %v253
    %v255 = vsel %vm249, %v236, 0.0
    %v256 = vadd.f32 %v254, %v255
    %v257 = vsel %vm249, %v237, 0.0
    %v258 = vadd.f32 %v256, %v257
    %v259 = vsel %vm249, %v238, 0.0
    %v260 = vadd.f32 %v258, %v259
    %v261 = vsel %vm249, %v239, 0.0
    %v262 = vadd.f32 %v260, %v261
    %v263 = vsel %vm249, %v240, 0.0
    %v264 = vadd.f32 %v262, %v263
    %v265 = vsel %vm249, %v241, 0.0
    %v266 = vadd.f32 %v264, %v265
    %v267 = vsel %vm249, %v242, 0.0
    %v268 = vadd.f32 %v266, %v267
    %v269 = vsel %vm249, %v243, 0.0
    %v270 = vadd.f32 %v268, %v269
    %v271 = vsel %vm249, %v244, 0.0
    %v272 = vadd.f32 %v270, %v271
    %v273 = vsel %vm249, %v245, 0.0
    %v274 = vadd.f32 %v272, %v273
    %v275 = vsel %vm249, %v246, 0.0
    %v276 = vadd.f32 %v274, %v275
    %v277 = vsel %vm249, %v247, 0.0
    %v278 = vadd.f32 %v276, %v277
    %v279 = vsel %vm249, %v248, 0.0
    %v280 = vadd.f32 %v278, %v279
    %281 = vadd.xlane.f32.xlu0 %v280
    %v282 = vpop.xlane.xlu0 %281
    %v283 = vrot.slane %v282, 4
    %v284 = vadd.f32 %v282, %v283
    %v285 = vrot.slane %v284, 2
    %v286 = vadd.f32 %v284, %v285
    %v287 = vrot.slane %v286, 1
    %v288 = vadd.f32 %v286, %v287
    %s289 = vtos %v288
    %s290 = scalar_lea.smem [#allocation5], 0
    %291 = sst [smem:[%s290]] %s289
    // Predicated region
    $region10: #{tpu_custom_call.1} parent=1 // pred_check
      _
    $region11: #{tpu_custom_call.1} parent=1 // pred_check_branch
      %293 = sbr.rel (0) target = $region13
    $region12: #{tpu_custom_call.1} parent=1 // pred_region
      %s295 = ssub.s32 16, 16
      %296 = vsyncadd [#allocation4], %s295
      %299 = dma.smem_to_hbm [#allocation5], 16, %s1, [#allocation4]
    $region13: #{tpu_custom_call.1} parent=1 // pred_fallthru
      _
    // Predicated region
    $region14: #{tpu_custom_call.1} parent=1 // pred_check
      _
    $region15: #{tpu_custom_call.1} parent=1 // pred_check_branch
      %301 = sbr.rel (0) target = $region17
    $region16: #{tpu_custom_call.1} parent=1 // pred_region
      %302 = dma.done [#allocation4], 16
    $region17: #{tpu_custom_call.1} parent=1 // pred_fallthru
      _
    %303 = sfence
    %304 = vsyncpa [#allocation3], 1
    %305 = vsyncpa [#allocation4], 1

</llo_original>
